<compile_context>
chip_gen: v5e
topology: v5e:2x2
jax: 0.10.0
libtpu: 0.0.40
codegen_flags: <defaults>
</compile_context>

<pallas_src>
import numpy as np

import jax
import jax.numpy as jnp
from jax.experimental import pallas as pl
from jax.experimental.pallas import tpu as pltpu


def double_conv_kernel(xp_ref, b1_ref, s1_ref, bb1_ref, b2_ref, s2_ref, bb2_ref,
                       o_ref, hpad_ref):
    # xp_ref  : (1, H+2, W*Cin)    row-padded input, (W, Cin) flattened onto lanes
    # b1_ref  : (3, W*Cin, W*Cout) banded conv1 weights (one slab per dh row tap)
    # s1/bb1  : (1, W*Cout)        folded BN1 scale / bias, tiled across W
    # b2_ref  : (3, W*Cout, W*Cout)
    # s2/bb2  : (1, W*Cout)
    # o_ref   : (1, H, W*Cout)     lane-dense output block
    # hpad_ref: (H+2, W*Cout)      VMEM scratch; rows 0 and H+1 are a zero halo
    H = o_ref.shape[1]
    WC = o_ref.shape[2]

    # ---- conv1: 3 banded matmuls; dw taps + zero-padding along W are inside the
    #      banded weight slabs, so each tap is just a contiguous row-slice. ----
    acc1 = jnp.dot(xp_ref[0, 0:H, :], b1_ref[0],
                   preferred_element_type=jnp.float32)
    acc1 += jnp.dot(xp_ref[0, 1:H + 1, :], b1_ref[1],
                    preferred_element_type=jnp.float32)
    acc1 += jnp.dot(xp_ref[0, 2:H + 2, :], b1_ref[2],
                    preferred_element_type=jnp.float32)
    # fused (folded) BatchNorm + ReLU
    h = jnp.maximum(acc1 * s1_ref[...] + bb1_ref[...], 0.0)

    # Hidden activation: zero only the 1-row halo, lane-dense interior store.
    hpad_ref[0:1, :] = jnp.zeros((1, WC), jnp.float32)
    hpad_ref[H + 1:H + 2, :] = jnp.zeros((1, WC), jnp.float32)
    hpad_ref[1:H + 1, :] = h

    # ---- conv2: same banded structure on the hidden activation ----
    acc2 = jnp.dot(hpad_ref[0:H, :], b2_ref[0],
                   preferred_element_type=jnp.float32)
    acc2 += jnp.dot(hpad_ref[1:H + 1, :], b2_ref[1],
                    preferred_element_type=jnp.float32)
    acc2 += jnp.dot(hpad_ref[2:H + 2, :], b2_ref[2],
                    preferred_element_type=jnp.float32)
    o_ref[0] = jnp.maximum(acc2 * s2_ref[...] + bb2_ref[...], 0.0)


def _banded_weights(w_hwio, W):
    """Fold the 3 dw taps + 'same' zero-padding along W into banded matrices.

    Returns B with B[dh, s*Cin + ci, w*Cout + co] = w_hwio[dh, dw, ci, co]
    where s = w + dw - 1 (entries with s outside [0, W) are zero).
    """
    _, _, Ci, Co = w_hwio.shape
    ind = np.zeros((3, W, W), np.float32)
    for dw in range(3):
        for w_out in range(W):
            s = w_out + dw - 1
            if 0 <= s < W:
                ind[dw, s, w_out] = 1.0
    ind = jnp.asarray(ind)
    B = jnp.einsum('dsw,hdio->hsiwo', ind, w_hwio)
    return B.reshape(3, W * Ci, W * Co)


def double_conv(x_nchw, params, eps=1e-5):
    (w1, b1c, g1, be1, rm1, rv1,
     w2, b2c, g2, be2, rm2, rv2) = params

    # Fold conv bias + BatchNorm (eval mode) into per-channel scale/bias.
    s1 = g1 / jnp.sqrt(rv1 + eps)
    bias1 = be1 + s1 * (b1c - rm1)
    s2 = g2 / jnp.sqrt(rv2 + eps)
    bias2 = be2 + s2 * (b2c - rm2)

    N, Cin, H, W = x_nchw.shape
    Cout = w1.shape[0]
    WCi, WCo = W * Cin, W * Cout

    # NCHW -> NHWC, pad rows only (width padding lives in the banded weights),
    # then flatten (W, C) onto the lane axis.
    x = jnp.transpose(x_nchw, (0, 2, 3, 1))                    # (N, H, W, Cin)
    xp = jnp.pad(x, ((0, 0), (1, 1), (0, 0), (0, 0)))          # (N, H+2, W, Cin)
    xp = xp.reshape(N, H + 2, WCi).astype(jnp.float32)

    # OIHW -> HWIO -> banded slabs.
    w1_hwio = jnp.transpose(w1, (2, 3, 1, 0)).astype(jnp.float32)
    w2_hwio = jnp.transpose(w2, (2, 3, 1, 0)).astype(jnp.float32)
    B1 = _banded_weights(w1_hwio, W)                           # (3, W*Cin, W*Cout)
    B2 = _banded_weights(w2_hwio, W)                           # (3, W*Cout, W*Cout)

    # Per-channel scale/bias tiled across W to match lane layout w*Cout + co.
    s1_t = jnp.tile(s1.astype(jnp.float32), W).reshape(1, WCo)
    b1_t = jnp.tile(bias1.astype(jnp.float32), W).reshape(1, WCo)
    s2_t = jnp.tile(s2.astype(jnp.float32), W).reshape(1, WCo)
    b2_t = jnp.tile(bias2.astype(jnp.float32), W).reshape(1, WCo)

    out_flat = pl.pallas_call(
        double_conv_kernel,
        out_shape=jax.ShapeDtypeStruct((N, H, WCo), jnp.float32),
        grid_spec=pltpu.PrefetchScalarGridSpec(
            num_scalar_prefetch=0,
            grid=(N,),
            in_specs=[
                pl.BlockSpec((1, H + 2, WCi), lambda n: (n, 0, 0)),
                pl.BlockSpec((3, WCi, WCo), lambda n: (0, 0, 0)),
                pl.BlockSpec((1, WCo), lambda n: (0, 0)),
                pl.BlockSpec((1, WCo), lambda n: (0, 0)),
                pl.BlockSpec((3, WCo, WCo), lambda n: (0, 0, 0)),
                pl.BlockSpec((1, WCo), lambda n: (0, 0)),
                pl.BlockSpec((1, WCo), lambda n: (0, 0)),
            ],
            out_specs=pl.BlockSpec((1, H, WCo), lambda n: (n, 0, 0)),
            scratch_shapes=[pltpu.VMEM((H + 2, WCo), jnp.float32)],
        ),
        compiler_params=pltpu.CompilerParams(
            dimension_semantics=("parallel",)),
    )(xp, B1, s1_t, b1_t, B2, s2_t, b2_t)

    # (N, H, W*Cout) -> (N, H, W, Cout) -> NCHW (PyTorch convention).
    out = out_flat.reshape(N, H, W, Cout)
    return jnp.transpose(out, (0, 3, 1, 2))


def ref_double_conv(x, params, eps=1e-5):
    """Pure-JAX reference mirroring the PyTorch module (eval-mode BN)."""
    (w1, b1c, g1, be1, rm1, rv1,
     w2, b2c, g2, be2, rm2, rv2) = params

    def conv(x, w, b):
        y = jax.lax.conv_general_dilated(
            x, w, window_strides=(1, 1), padding="SAME",
            dimension_numbers=("NCHW", "OIHW", "NCHW"))
        return y + b[None, :, None, None]

    def bn(x, g, be, rm, rv):
        return (g[None, :, None, None] * (x - rm[None, :, None, None])
                / jnp.sqrt(rv[None, :, None, None] + eps)
                + be[None, :, None, None])

    h = jnp.maximum(bn(conv(x, w1, b1c), g1, be1, rm1, rv1), 0.0)
    return jnp.maximum(bn(conv(h, w2, b2c), g2, be2, rm2, rv2), 0.0)


if __name__ == "__main__":
    in_ch, out_ch = 4, 8
    N, H, W = 2, 16, 16

    key = jax.random.PRNGKey(0)
    ks = jax.random.split(key, 14)

    x = jax.random.normal(ks[0], (N, in_ch, H, W), jnp.float32)

    # Conv1 + BN1 params (deterministic, synthetic)
    w1 = 0.1 * jax.random.normal(ks[1], (out_ch, in_ch, 3, 3), jnp.float32)
    b1 = 0.1 * jax.random.normal(ks[2], (out_ch,), jnp.float32)
    g1 = 1.0 + 0.1 * jax.random.normal(ks[3], (out_ch,), jnp.float32)
    be1 = 0.1 * jax.random.normal(ks[4], (out_ch,), jnp.float32)
    rm1 = 0.1 * jax.random.normal(ks[5], (out_ch,), jnp.float32)
    rv1 = jnp.abs(jax.random.normal(ks[6], (out_ch,), jnp.float32)) + 0.5

    # Conv2 + BN2 params
    w2 = 0.1 * jax.random.normal(ks[7], (out_ch, out_ch, 3, 3), jnp.float32)
    b2 = 0.1 * jax.random.normal(ks[8], (out_ch,), jnp.float32)
    g2 = 1.0 + 0.1 * jax.random.normal(ks[9], (out_ch,), jnp.float32)
    be2 = 0.1 * jax.random.normal(ks[10], (out_ch,), jnp.float32)
    rm2 = 0.1 * jax.random.normal(ks[11], (out_ch,), jnp.float32)
    rv2 = jnp.abs(jax.random.normal(ks[12], (out_ch,), jnp.float32)) + 0.5

    params = (w1, b1, g1, be1, rm1, rv1, w2, b2, g2, be2, rm2, rv2)

    out = double_conv(x, params)
    out = jax.block_until_ready(out)

    ref = ref_double_conv(x, params)
    max_err = float(jnp.max(jnp.abs(out - ref)))
    assert out.shape == (N, out_ch, H, W), out.shape
    assert max_err < 1e-4, f"max abs error {max_err}"
    print("KERNEL_OK")
</pallas_src>

<mosaic_0001>
module attributes {stable_mosaic.version = 11 : i64} {
  func.func @double_conv_kernel(%arg0: i32, %arg1: memref<1x18x64xf32, #tpu.memory_space<vmem>>, %arg2: memref<3x64x128xf32, #tpu.memory_space<vmem>>, %arg3: memref<1x128xf32, #tpu.memory_space<vmem>>, %arg4: memref<1x128xf32, #tpu.memory_space<vmem>>, %arg5: memref<3x128x128xf32, #tpu.memory_space<vmem>>, %arg6: memref<1x128xf32, #tpu.memory_space<vmem>>, %arg7: memref<1x128xf32, #tpu.memory_space<vmem>>, %arg8: memref<1x16x128xf32, #tpu.memory_space<vmem>>, %arg9: memref<18x128xf32, #tpu.memory_space<vmem>>) attributes {dimension_semantics = [#tpu.dimension_semantics<parallel>], iteration_bounds = array<i64: 2>, scalar_prefetch = 0 : i64, scratch_operands = 1 : i64, tpu.core_type = #tpu.core_type<tc>, window_params = [{transform_indices = @transform_0, window_bounds = array<i64: 1, 18, 64>}, {pipeline_mode = #tpu.pipeline_mode<synchronous>, transform_indices = @transform_1, window_bounds = array<i64: 3, 64, 128>}, {pipeline_mode = #tpu.pipeline_mode<synchronous>, transform_indices = @transform_2, window_bounds = array<i64: 1, 128>}, {pipeline_mode = #tpu.pipeline_mode<synchronous>, transform_indices = @transform_3, window_bounds = array<i64: 1, 128>}, {pipeline_mode = #tpu.pipeline_mode<synchronous>, transform_indices = @transform_4, window_bounds = array<i64: 3, 128, 128>}, {pipeline_mode = #tpu.pipeline_mode<synchronous>, transform_indices = @transform_5, window_bounds = array<i64: 1, 128>}, {pipeline_mode = #tpu.pipeline_mode<synchronous>, transform_indices = @transform_6, window_bounds = array<i64: 1, 128>}, {transform_indices = @transform_7, window_bounds = array<i64: 1, 16, 128>}]} {
    %c0 = arith.constant 0 : index
    %c0_0 = arith.constant 0 : index
    %c0_1 = arith.constant 0 : index
    %0 = vector.load %arg1[%c0, %c0_0, %c0_1] : memref<1x18x64xf32, #tpu.memory_space<vmem>>, vector<1x16x64xf32>
    %1 = vector.shape_cast %0 : vector<1x16x64xf32> to vector<16x64xf32>
    %c0_2 = arith.constant 0 : index
    %c0_3 = arith.constant 0 : index
    %c0_4 = arith.constant 0 : index
    %2 = vector.load %arg2[%c0_2, %c0_3, %c0_4] : memref<3x64x128xf32, #tpu.memory_space<vmem>>, vector<1x64x128xf32>
    %3 = vector.shape_cast %2 : vector<1x64x128xf32> to vector<64x128xf32>
    %cst = arith.constant dense<0.000000e+00> : vector<16x128xf32>
    %4 = tpu.matmul %1, %3, %cst {dimension_numbers = #tpu.dot_dimension_numbers<[1], [0], [0], [1], [0, 0, 1, 1], [], []>} : vector<16x64xf32>, vector<64x128xf32>, vector<16x128xf32> -> vector<16x128xf32>
    %c0_5 = arith.constant 0 : index
    %c1 = arith.constant 1 : index
    %c0_6 = arith.constant 0 : index
    %5 = vector.load %arg1[%c0_5, %c1, %c0_6] : memref<1x18x64xf32, #tpu.memory_space<vmem>>, vector<1x16x64xf32>
    %6 = vector.shape_cast %5 : vector<1x16x64xf32> to vector<16x64xf32>
    %c1_7 = arith.constant 1 : index
    %c0_8 = arith.constant 0 : index
    %c0_9 = arith.constant 0 : index
    %7 = vector.load %arg2[%c1_7, %c0_8, %c0_9] : memref<3x64x128xf32, #tpu.memory_space<vmem>>, vector<1x64x128xf32>
    %8 = vector.shape_cast %7 : vector<1x64x128xf32> to vector<64x128xf32>
    %cst_10 = arith.constant dense<0.000000e+00> : vector<16x128xf32>
    %9 = tpu.matmul %6, %8, %cst_10 {dimension_numbers = #tpu.dot_dimension_numbers<[1], [0], [0], [1], [0, 0, 1, 1], [], []>} : vector<16x64xf32>, vector<64x128xf32>, vector<16x128xf32> -> vector<16x128xf32>
    %10 = arith.addf %4, %9 : vector<16x128xf32>
    %c0_11 = arith.constant 0 : index
    %c2 = arith.constant 2 : index
    %c0_12 = arith.constant 0 : index
    %11 = vector.load %arg1[%c0_11, %c2, %c0_12] : memref<1x18x64xf32, #tpu.memory_space<vmem>>, vector<1x16x64xf32>
    %12 = vector.shape_cast %11 : vector<1x16x64xf32> to vector<16x64xf32>
    %c2_13 = arith.constant 2 : index
    %c0_14 = arith.constant 0 : index
    %c0_15 = arith.constant 0 : index
    %13 = vector.load %arg2[%c2_13, %c0_14, %c0_15] : memref<3x64x128xf32, #tpu.memory_space<vmem>>, vector<1x64x128xf32>
    %14 = vector.shape_cast %13 : vector<1x64x128xf32> to vector<64x128xf32>
    %cst_16 = arith.constant dense<0.000000e+00> : vector<16x128xf32>
    %15 = tpu.matmul %12, %14, %cst_16 {dimension_numbers = #tpu.dot_dimension_numbers<[1], [0], [0], [1], [0, 0, 1, 1], [], []>} : vector<16x64xf32>, vector<64x128xf32>, vector<16x128xf32> -> vector<16x128xf32>
    %16 = arith.addf %10, %15 : vector<16x128xf32>
    %c0_17 = arith.constant 0 : index
    %c0_18 = arith.constant 0 : index
    %17 = vector.load %arg3[%c0_17, %c0_18] : memref<1x128xf32, #tpu.memory_space<vmem>>, vector<1x128xf32>
    %18 = vector.broadcast %17 : vector<1x128xf32> to vector<16x128xf32>
    %19 = arith.mulf %16, %18 : vector<16x128xf32>
    %c0_19 = arith.constant 0 : index
    %c0_20 = arith.constant 0 : index
    %20 = vector.load %arg4[%c0_19, %c0_20] : memref<1x128xf32, #tpu.memory_space<vmem>>, vector<1x128xf32>
    %21 = vector.broadcast %20 : vector<1x128xf32> to vector<16x128xf32>
    %22 = arith.addf %19, %21 : vector<16x128xf32>
    %cst_21 = arith.constant 0.000000e+00 : f32
    %23 = vector.broadcast %cst_21 : f32 to vector<16x128xf32>
    %24 = arith.maximumf %22, %23 : vector<16x128xf32>
    %cst_22 = arith.constant 0.000000e+00 : f32
    %25 = vector.broadcast %cst_22 : f32 to vector<1x128xf32>
    %c0_23 = arith.constant 0 : index
    %c0_24 = arith.constant 0 : index
    %26 = vector.load %arg9[%c0_23, %c0_24] : memref<18x128xf32, #tpu.memory_space<vmem>>, vector<1x128xf32>
    tpu.vector_store %arg9[%c0_23, %c0_24], %25 {strides = array<i32>} : memref<18x128xf32, #tpu.memory_space<vmem>>, vector<1x128xf32>,
    %cst_25 = arith.constant 0.000000e+00 : f32
    %27 = vector.broadcast %cst_25 : f32 to vector<1x128xf32>
    %c17 = arith.constant 17 : index
    %c0_26 = arith.constant 0 : index
    %28 = vector.load %arg9[%c17, %c0_26] : memref<18x128xf32, #tpu.memory_space<vmem>>, vector<1x128xf32>
    tpu.vector_store %arg9[%c17, %c0_26], %27 {strides = array<i32>} : memref<18x128xf32, #tpu.memory_space<vmem>>, vector<1x128xf32>,
    %c1_27 = arith.constant 1 : index
    %c0_28 = arith.constant 0 : index
    %29 = vector.load %arg9[%c1_27, %c0_28] : memref<18x128xf32, #tpu.memory_space<vmem>>, vector<16x128xf32>
    tpu.vector_store %arg9[%c1_27, %c0_28], %24 {strides = array<i32>} : memref<18x128xf32, #tpu.memory_space<vmem>>, vector<16x128xf32>,
    %c0_29 = arith.constant 0 : index
    %c0_30 = arith.constant 0 : index
    %30 = vector.load %arg9[%c0_29, %c0_30] : memref<18x128xf32, #tpu.memory_space<vmem>>, vector<16x128xf32>
    %c0_31 = arith.constant 0 : index
    %c0_32 = arith.constant 0 : index
    %c0_33 = arith.constant 0 : index
    %31 = vector.load %arg5[%c0_31, %c0_32, %c0_33] : memref<3x128x128xf32, #tpu.memory_space<vmem>>, vector<1x128x128xf32>
    %32 = vector.shape_cast %31 : vector<1x128x128xf32> to vector<128x128xf32>
    %cst_34 = arith.constant dense<0.000000e+00> : vector<16x128xf32>
    %33 = tpu.matmul %30, %32, %cst_34 {dimension_numbers = #tpu.dot_dimension_numbers<[1], [0], [0], [1], [0, 0, 1, 1], [], []>} : vector<16x128xf32>, vector<128x128xf32>, vector<16x128xf32> -> vector<16x128xf32>
    %c1_35 = arith.constant 1 : index
    %c0_36 = arith.constant 0 : index
    %34 = vector.load %arg9[%c1_35, %c0_36] : memref<18x128xf32, #tpu.memory_space<vmem>>, vector<16x128xf32>
    %c1_37 = arith.constant 1 : index
    %c0_38 = arith.constant 0 : index
    %c0_39 = arith.constant 0 : index
    %35 = vector.load %arg5[%c1_37, %c0_38, %c0_39] : memref<3x128x128xf32, #tpu.memory_space<vmem>>, vector<1x128x128xf32>
    %36 = vector.shape_cast %35 : vector<1x128x128xf32> to vector<128x128xf32>
    %cst_40 = arith.constant dense<0.000000e+00> : vector<16x128xf32>
    %37 = tpu.matmul %34, %36, %cst_40 {dimension_numbers = #tpu.dot_dimension_numbers<[1], [0], [0], [1], [0, 0, 1, 1], [], []>} : vector<16x128xf32>, vector<128x128xf32>, vector<16x128xf32> -> vector<16x128xf32>
    %38 = arith.addf %33, %37 : vector<16x128xf32>
    %c2_41 = arith.constant 2 : index
    %c0_42 = arith.constant 0 : index
    %39 = vector.load %arg9[%c2_41, %c0_42] : memref<18x128xf32, #tpu.memory_space<vmem>>, vector<16x128xf32>
    %c2_43 = arith.constant 2 : index
    %c0_44 = arith.constant 0 : index
    %c0_45 = arith.constant 0 : index
    %40 = vector.load %arg5[%c2_43, %c0_44, %c0_45] : memref<3x128x128xf32, #tpu.memory_space<vmem>>, vector<1x128x128xf32>
    %41 = vector.shape_cast %40 : vector<1x128x128xf32> to vector<128x128xf32>
    %cst_46 = arith.constant dense<0.000000e+00> : vector<16x128xf32>
    %42 = tpu.matmul %39, %41, %cst_46 {dimension_numbers = #tpu.dot_dimension_numbers<[1], [0], [0], [1], [0, 0, 1, 1], [], []>} : vector<16x128xf32>, vector<128x128xf32>, vector<16x128xf32> -> vector<16x128xf32>
    %43 = arith.addf %38, %42 : vector<16x128xf32>
    %c0_47 = arith.constant 0 : index
    %c0_48 = arith.constant 0 : index
    %44 = vector.load %arg6[%c0_47, %c0_48] : memref<1x128xf32, #tpu.memory_space<vmem>>, vector<1x128xf32>
    %45 = vector.broadcast %44 : vector<1x128xf32> to vector<16x128xf32>
    %46 = arith.mulf %43, %45 : vector<16x128xf32>
    %c0_49 = arith.constant 0 : index
    %c0_50 = arith.constant 0 : index
    %47 = vector.load %arg7[%c0_49, %c0_50] : memref<1x128xf32, #tpu.memory_space<vmem>>, vector<1x128xf32>
    %48 = vector.broadcast %47 : vector<1x128xf32> to vector<16x128xf32>
    %49 = arith.addf %46, %48 : vector<16x128xf32>
    %cst_51 = arith.constant 0.000000e+00 : f32
    %50 = vector.broadcast %cst_51 : f32 to vector<16x128xf32>
    %51 = arith.maximumf %49, %50 : vector<16x128xf32>
    %c0_52 = arith.constant 0 : index
    %c0_53 = arith.constant 0 : index
    %c0_54 = arith.constant 0 : index
    %52 = vector.load %arg8[%c0_52, %c0_53, %c0_54] : memref<1x16x128xf32, #tpu.memory_space<vmem>>, vector<1x16x128xf32>
    %53 = vector.shape_cast %52 : vector<1x16x128xf32> to vector<16x128xf32>
    %54 = vector.shape_cast %51 : vector<16x128xf32> to vector<1x16x128xf32>
    tpu.vector_store %arg8[%c0_52, %c0_53, %c0_54], %54 {strides = array<i32>} : memref<1x16x128xf32, #tpu.memory_space<vmem>>, vector<1x16x128xf32>,
    return
  }
  func.func @transform_0(%arg0: i32) -> (i32, i32, i32) {
    %c0_i32 = arith.constant 0 : i32
    %c0_i32_0 = arith.constant 0 : i32
    %c0_i32_1 = arith.constant 0 : i32
    return %arg0, %c0_i32, %c0_i32_0 : i32, i32, i32
  }
  func.func @transform_1(%arg0: i32) -> (i32, i32, i32) {
    %c0_i32 = arith.constant 0 : i32
    %c0_i32_0 = arith.constant 0 : i32
    %c0_i32_1 = arith.constant 0 : i32
    %c0_i32_2 = arith.constant 0 : i32
    return %c0_i32, %c0_i32_0, %c0_i32_1 : i32, i32, i32
  }
  func.func @transform_2(%arg0: i32) -> (i32, i32) {
    %c0_i32 = arith.constant 0 : i32
    %c0_i32_0 = arith.constant 0 : i32
    %c0_i32_1 = arith.constant 0 : i32
    return %c0_i32, %c0_i32_0 : i32, i32
  }
  func.func @transform_3(%arg0: i32) -> (i32, i32) {
    %c0_i32 = arith.constant 0 : i32
    %c0_i32_0 = arith.constant 0 : i32
    %c0_i32_1 = arith.constant 0 : i32
    return %c0_i32, %c0_i32_0 : i32, i32
  }
  func.func @transform_4(%arg0: i32) -> (i32, i32, i32) {
    %c0_i32 = arith.constant 0 : i32
    %c0_i32_0 = arith.constant 0 : i32
    %c0_i32_1 = arith.constant 0 : i32
    %c0_i32_2 = arith.constant 0 : i32
    return %c0_i32, %c0_i32_0, %c0_i32_1 : i32, i32, i32
  }
  func.func @transform_5(%arg0: i32) -> (i32, i32) {
    %c0_i32 = arith.constant 0 : i32
    %c0_i32_0 = arith.constant 0 : i32
    %c0_i32_1 = arith.constant 0 : i32
    return %c0_i32, %c0_i32_0 : i32, i32
  }
  func.func @transform_6(%arg0: i32) -> (i32, i32) {
    %c0_i32 = arith.constant 0 : i32
    %c0_i32_0 = arith.constant 0 : i32
    %c0_i32_1 = arith.constant 0 : i32
    return %c0_i32, %c0_i32_0 : i32, i32
  }
  func.func @transform_7(%arg0: i32) -> (i32, i32, i32) {
    %c0_i32 = arith.constant 0 : i32
    %c0_i32_0 = arith.constant 0 : i32
    %c0_i32_1 = arith.constant 0 : i32
    return %arg0, %c0_i32, %c0_i32_0 : i32, i32, i32
  }
}

</mosaic_0001>

<llo_original>
// kernel: tpu_custom_call.1
$region0: #{tpu_custom_call.1}
  #allocation0 [shape = 'u32[]', space=smem, size = 0x4, offset = 0x4, fixed_abs, tag = 'smem constant byte address 0x4 - core index']
  #allocation1 [shape = 'u32[72,128]{1,0:T(1,128)}', space=vmem, size = 0x9000, scoped, tag = 'internal scratch']
  #allocation2 [shape = 'f32[18,128]{1,0:T(8,128)}', space=vmem, size = 0x3000, scoped, tag = 'scratch operand']
  %s0 = inlined_call_operand.vmem [shape: f32[2,18,64], index: 0, kind: input, shape index: {}]
  %s1 = inlined_call_operand.hbm [shape: f32[3,64,128], index: 1, kind: input, shape index: {}]
  %s2 = inlined_call_operand.vmem [shape: f32[1,128], index: 2, kind: input, shape index: {}]
  %s3 = inlined_call_operand.vmem [shape: f32[1,128], index: 3, kind: input, shape index: {}]
  %s4 = inlined_call_operand.hbm [shape: f32[3,128,128], index: 4, kind: input, shape index: {}]
  %s5 = inlined_call_operand.vmem [shape: f32[1,128], index: 5, kind: input, shape index: {}]
  %s6 = inlined_call_operand.vmem [shape: f32[1,128], index: 6, kind: input, shape index: {}]
  %s7 = inlined_call_operand.hbm [shape: f32[2,16,128], index: 7, kind: output, shape index: {}]
  %s8 = sld [smem:[#allocation0]]
  $region69: #{tpu_custom_call.1} parent=0
    _
  %s10 = ssub.s32 1, %s8
  %s11 = scalar_select 0, %s10, %s8
  $region1: #{tpu_custom_call.1} parent=0
    #allocation3 [shape = 'u8[98304]{0}', space=vmem, size = 0x18000, scoped, tag = 'input window, operand 1, single buffered']
    #allocation4 [shape = 's32[2]{0}', space=sflag, size = 0x8, scoped, tag = 'scoped memory for tpu_custom_call.1']
    #allocation5 [shape = 's32[2]{0}', space=sflag, size = 0x8, scoped, tag = 'scoped memory for tpu_custom_call.1']
    #allocation6 [shape = 'u8[196608]{0}', space=vmem, size = 0x30000, scoped, tag = 'input window, operand 4, single buffered']
    #allocation7 [shape = 's32[1]{0}', space=sflag, size = 0x4, scoped, tag = 'scoped memory for tpu_custom_call.1']
    #allocation8 [shape = 'u8[16384]{0}', space=vmem, size = 0x4000, scoped, tag = 'output window, operand 0']
    %12 = vsyncpa [#allocation4], 0
    %13 = vsyncpa [#allocation7], 0
    %14 = vsyncpa [#allocation5], 0
    %s15 = scalar_lea.sflag [#allocation5], 1
    %16 = vsyncpa %s15, 0
    loop: start=0, step=1, limit=4
    $region2: #{tpu_custom_call.1} parent=1 // loop_pre_header
      _
    $region3: #{tpu_custom_call.1} parent=1 // loop_header
      %s18 = sphi 0, %s22
      %p19 = scmp.ge.s32.totalorder %s18, 4
      %s28 = sphi 0, %s30
      %s31 = sphi 0, %s28
      %s32 = sphi 0, %s31
      %s48 = sphi 0, %s32
      %s52 = sphi 0, %s52
      %s54 = sphi 0, %s52
      %s55 = sphi 0, %s54
      %s69 = sphi 0, %s55
      %s73 = sphi 0, %s73
      %s75 = sphi 0, %s73
      %s76 = sphi 0, %s75
      %s90 = sphi 0, %s76
      %s94 = sphi 0, %s94
      %s96 = sphi 0, %s94
      %s97 = sphi 0, %s96
      %s111 = sphi 0, %s97
      %s115 = sphi 0, %s115
      %s117 = sphi 0, %s115
      %s118 = sphi 0, %s117
      %s132 = sphi 0, %s118
      %s136 = sphi 0, %s136
      %s138 = sphi 0, %s136
      %s139 = sphi 0, %s138
      %s153 = sphi 0, %s139
      %s157 = sphi 0, %s157
      %s159 = sphi 0, %s157
      %s160 = sphi 0, %s159
      %s174 = sphi 0, %s160
      %s180 = sphi 0, %s182
      %s183 = sphi 0, %s180
      %s184 = sphi 0, %s183
      %s200 = sphi 0, %s184
    $region4: #{tpu_custom_call.1} parent=1 // loop_header_branch
      %21 = sbr.rel (%p19) target = $region8
    $region5: #{tpu_custom_call.1} parent=1 // loop_body
      %s23 = ssub.s32 %s18, 1
      %s24 = ssub.s32 %s18, 2
      %s25 = sadd.s32 %s18, 1
      %s26 = ssub.s32 %s18, %s25
      %p27 = scmp.eq.s32.totalorder %s26, 0
      %s29 = sadd.s32 %s28, 1
      %s30 = scalar_select %p27, %s28, %s29
      %p33 = pneg %p27
      %p34 = scmp.eq.s32.totalorder %s18, 1
      %p35 = por %p33, %p34
      %p36 = scmp.ne.s32.totalorder %s28, %s31
      %p37 = scmp.eq.s32.totalorder %s18, 0
      %p38 = por %p36, %p37
      %p39 = scmp.ne.s32.totalorder %s28, %s31
      %p40 = scmp.eq.s32.totalorder %s23, 1
      %p41 = por %p39, %p40
      %p42 = scmp.ne.s32.totalorder %s31, %s32
      %p43 = scmp.eq.s32.totalorder %s23, 0
      %p44 = por %p42, %p43
      %p45 = scmp.ne.s32.totalorder %s31, %s32
      %p46 = scmp.eq.s32.totalorder %s24, 1
      %p47 = por %p45, %p46
      %p49 = scmp.ne.s32.totalorder %s32, %s48
      %p50 = scmp.eq.s32.totalorder %s24, 0
      %p51 = por %p49, %p50
      %s53 = sadd.s32 %s52, 1
      %p56 = scmp.eq.s32.totalorder %s18, 1
      %p57 = scmp.ne.s32.totalorder %s52, %s54
      %p58 = scmp.eq.s32.totalorder %s18, 0
      %p59 = por %p57, %p58
      %p60 = scmp.ne.s32.totalorder %s52, %s54
      %p61 = scmp.eq.s32.totalorder %s23, 1
      %p62 = por %p60, %p61
      %p63 = scmp.ne.s32.totalorder %s54, %s55
      %p64 = scmp.eq.s32.totalorder %s23, 0
      %p65 = por %p63, %p64
      %p66 = scmp.ne.s32.totalorder %s54, %s55
      %p67 = scmp.eq.s32.totalorder %s24, 1
      %p68 = por %p66, %p67
      %p70 = scmp.ne.s32.totalorder %s55, %s69
      %p71 = scmp.eq.s32.totalorder %s24, 0
      %p72 = por %p70, %p71
      %s74 = sadd.s32 %s73, 1
      %p77 = scmp.eq.s32.totalorder %s18, 1
      %p78 = scmp.ne.s32.totalorder %s73, %s75
      %p79 = scmp.eq.s32.totalorder %s18, 0
      %p80 = por %p78, %p79
      %p81 = scmp.ne.s32.totalorder %s73, %s75
      %p82 = scmp.eq.s32.totalorder %s23, 1
      %p83 = por %p81, %p82
      %p84 = scmp.ne.s32.totalorder %s75, %s76
      %p85 = scmp.eq.s32.totalorder %s23, 0
      %p86 = por %p84, %p85
      %p87 = scmp.ne.s32.totalorder %s75, %s76
      %p88 = scmp.eq.s32.totalorder %s24, 1
      %p89 = por %p87, %p88
      %p91 = scmp.ne.s32.totalorder %s76, %s90
      %p92 = scmp.eq.s32.totalorder %s24, 0
      %p93 = por %p91, %p92
      %s95 = sadd.s32 %s94, 1
      %p98 = scmp.eq.s32.totalorder %s18, 1
      %p99 = scmp.ne.s32.totalorder %s94, %s96
      %p100 = scmp.eq.s32.totalorder %s18, 0
      %p101 = por %p99, %p100
      %p102 = scmp.ne.s32.totalorder %s94, %s96
      %p103 = scmp.eq.s32.totalorder %s23, 1
      %p104 = por %p102, %p103
      %p105 = scmp.ne.s32.totalorder %s96, %s97
      %p106 = scmp.eq.s32.totalorder %s23, 0
      %p107 = por %p105, %p106
      %p108 = scmp.ne.s32.totalorder %s96, %s97
      %p109 = scmp.eq.s32.totalorder %s24, 1
      %p110 = por %p108, %p109
      %p112 = scmp.ne.s32.totalorder %s97, %s111
      %p113 = scmp.eq.s32.totalorder %s24, 0
      %p114 = por %p112, %p113
      %s116 = sadd.s32 %s115, 1
      %p119 = scmp.eq.s32.totalorder %s18, 1
      %p120 = scmp.ne.s32.totalorder %s115, %s117
      %p121 = scmp.eq.s32.totalorder %s18, 0
      %p122 = por %p120, %p121
      %p123 = scmp.ne.s32.totalorder %s115, %s117
      %p124 = scmp.eq.s32.totalorder %s23, 1
      %p125 = por %p123, %p124
      %p126 = scmp.ne.s32.totalorder %s117, %s118
      %p127 = scmp.eq.s32.totalorder %s23, 0
      %p128 = por %p126, %p127
      %p129 = scmp.ne.s32.totalorder %s117, %s118
      %p130 = scmp.eq.s32.totalorder %s24, 1
      %p131 = por %p129, %p130
      %p133 = scmp.ne.s32.totalorder %s118, %s132
      %p134 = scmp.eq.s32.totalorder %s24, 0
      %p135 = por %p133, %p134
      %s137 = sadd.s32 %s136, 1
      %p140 = scmp.eq.s32.totalorder %s18, 1
      %p141 = scmp.ne.s32.totalorder %s136, %s138
      %p142 = scmp.eq.s32.totalorder %s18, 0
      %p143 = por %p141, %p142
      %p144 = scmp.ne.s32.totalorder %s136, %s138
      %p145 = scmp.eq.s32.totalorder %s23, 1
      %p146 = por %p144, %p145
      %p147 = scmp.ne.s32.totalorder %s138, %s139
      %p148 = scmp.eq.s32.totalorder %s23, 0
      %p149 = por %p147, %p148
      %p150 = scmp.ne.s32.totalorder %s138, %s139
      %p151 = scmp.eq.s32.totalorder %s24, 1
      %p152 = por %p150, %p151
      %p154 = scmp.ne.s32.totalorder %s139, %s153
      %p155 = scmp.eq.s32.totalorder %s24, 0
      %p156 = por %p154, %p155
      %s158 = sadd.s32 %s157, 1
      %p161 = scmp.eq.s32.totalorder %s18, 1
      %p162 = scmp.ne.s32.totalorder %s157, %s159
      %p163 = scmp.eq.s32.totalorder %s18, 0
      %p164 = por %p162, %p163
      %p165 = scmp.ne.s32.totalorder %s157, %s159
      %p166 = scmp.eq.s32.totalorder %s23, 1
      %p167 = por %p165, %p166
      %p168 = scmp.ne.s32.totalorder %s159, %s160
      %p169 = scmp.eq.s32.totalorder %s23, 0
      %p170 = por %p168, %p169
      %p171 = scmp.ne.s32.totalorder %s159, %s160
      %p172 = scmp.eq.s32.totalorder %s24, 1
      %p173 = por %p171, %p172
      %p175 = scmp.ne.s32.totalorder %s160, %s174
      %p176 = scmp.eq.s32.totalorder %s24, 0
      %p177 = por %p175, %p176
      %s178 = ssub.s32 %s18, %s25
      %p179 = scmp.eq.s32.totalorder %s178, 0
      %s181 = sadd.s32 %s180, 1
      %s182 = scalar_select %p179, %s180, %s181
      %p185 = pneg %p179
      %p186 = scmp.eq.s32.totalorder %s18, 1
      %p187 = por %p185, %p186
      %p188 = scmp.ne.s32.totalorder %s180, %s183
      %p189 = scmp.eq.s32.totalorder %s18, 0
      %p190 = por %p188, %p189
      %p191 = scmp.ne.s32.totalorder %s180, %s183
      %p192 = scmp.eq.s32.totalorder %s23, 1
      %p193 = por %p191, %p192
      %p194 = scmp.ne.s32.totalorder %s183, %s184
      %p195 = scmp.eq.s32.totalorder %s23, 0
      %p196 = por %p194, %p195
      %p197 = scmp.ne.s32.totalorder %s183, %s184
      %p198 = scmp.eq.s32.totalorder %s24, 1
      %p199 = por %p197, %p198
      %p201 = scmp.ne.s32.totalorder %s184, %s200
      %p202 = scmp.eq.s32.totalorder %s24, 0
      %p203 = por %p201, %p202
      %p204 = scmp.le.s32.totalorder 1, %s18
      %p205 = scmp.lt.s32.totalorder %s18, 3
      %p206 = pnand %p204, %p205
      %p207 = pneg %p206
      // Predicated region
      $region9: #{tpu_custom_call.1} parent=5 // pred_check
        _
      $region10: #{tpu_custom_call.1} parent=5 // pred_check_branch
        %209 = sbr.rel (%p206) target = $region12
      $region11: #{tpu_custom_call.1} parent=5 // pred_region
        %s210 = ssub.s32 %s18, 1
        // Predicated region
        $region13: #{tpu_custom_call.1} parent=11 // pred_check
          %p211 = pneg %p65
        $region14: #{tpu_custom_call.1} parent=11 // pred_check_branch
          %213 = sbr.rel (%p211) target = $region16
        $region15: #{tpu_custom_call.1} parent=11 // pred_region
          %215 = vsyncadd [#allocation4], 0
          %s216 = sshll.u32 %s1, 4
          %s217 = int_to_ptr.hbm [resolvable:$true] %s216
          %s218 = sshll.u32 [#allocation3], 4
          %s219 = int_to_ptr.vmem [resolvable:$true] %s218
          %224 = dma.hbm_to_vmem [thread:$0]  %s217, 3072, %s219, [#allocation4], 128, 128, 8
        $region16: #{tpu_custom_call.1} parent=11 // pred_fallthru
          _
        // Predicated region
        $region17: #{tpu_custom_call.1} parent=11 // pred_check
          %p225 = pneg %p86
        $region18: #{tpu_custom_call.1} parent=11 // pred_check_branch
          %227 = sbr.rel (%p225) target = $region20
        $region19: #{tpu_custom_call.1} parent=11 // pred_region
          _
        $region20: #{tpu_custom_call.1} parent=11 // pred_fallthru
          _
        // Predicated region
        $region21: #{tpu_custom_call.1} parent=11 // pred_check
          %p228 = pneg %p107
        $region22: #{tpu_custom_call.1} parent=11 // pred_check_branch
          %230 = sbr.rel (%p228) target = $region24
        $region23: #{tpu_custom_call.1} parent=11 // pred_region
          _
        $region24: #{tpu_custom_call.1} parent=11 // pred_fallthru
          _
        // Predicated region
        $region25: #{tpu_custom_call.1} parent=11 // pred_check
          %p231 = pneg %p128
        $region26: #{tpu_custom_call.1} parent=11 // pred_check_branch
          %233 = sbr.rel (%p231) target = $region28
        $region27: #{tpu_custom_call.1} parent=11 // pred_region
          %235 = vsyncadd [#allocation7], 0
          %s236 = sshll.u32 %s4, 4
          %s237 = int_to_ptr.hbm [resolvable:$true] %s236
          %s238 = sshll.u32 [#allocation6], 4
          %s239 = int_to_ptr.vmem [resolvable:$true] %s238
          %244 = dma.hbm_to_vmem [thread:$0]  %s237, 6144, %s239, [#allocation7], 128, 128, 8
        $region28: #{tpu_custom_call.1} parent=11 // pred_fallthru
          _
        // Predicated region
        $region29: #{tpu_custom_call.1} parent=11 // pred_check
          %p245 = pneg %p149
        $region30: #{tpu_custom_call.1} parent=11 // pred_check_branch
          %247 = sbr.rel (%p245) target = $region32
        $region31: #{tpu_custom_call.1} parent=11 // pred_region
          _
        $region32: #{tpu_custom_call.1} parent=11 // pred_fallthru
          _
        // Predicated region
        $region33: #{tpu_custom_call.1} parent=11 // pred_check
          %p248 = pneg %p170
        $region34: #{tpu_custom_call.1} parent=11 // pred_check_branch
          %250 = sbr.rel (%p248) target = $region36
        $region35: #{tpu_custom_call.1} parent=11 // pred_region
          _
        $region36: #{tpu_custom_call.1} parent=11 // pred_fallthru
          _
      $region12: #{tpu_custom_call.1} parent=5 // pred_fallthru
        _
      %p251 = scmp.lt.s32.totalorder %s18, 2
      // Predicated region
      $region37: #{tpu_custom_call.1} parent=5 // pred_check
        %p252 = pneg %p251
      $region38: #{tpu_custom_call.1} parent=5 // pred_check_branch
        %254 = sbr.rel (%p252) target = $region40
      $region39: #{tpu_custom_call.1} parent=5 // pred_region
        // Predicated region
        $region41: #{tpu_custom_call.1} parent=39 // pred_check
          %p255 = pneg %p38
        $region42: #{tpu_custom_call.1} parent=39 // pred_check_branch
          %257 = sbr.rel (%p255) target = $region44
        $region43: #{tpu_custom_call.1} parent=39 // pred_region
          %p258 = scmp.lt.s32.totalorder %s18, 1
          %s259 = scalar_select %p258, %s18, 1
          %s260 = smul.addr %s259, 3
          %s261 = smul.addr %s260, 8
          %s262 = scalar_lea.vmem %s0, %s261
        $region44: #{tpu_custom_call.1} parent=39 // pred_fallthru
          _
      $region40: #{tpu_custom_call.1} parent=5 // pred_fallthru
        _
      %p263 = scmp.le.s32.totalorder 1, %s18
      %p264 = scmp.lt.s32.totalorder %s18, 3
      %p265 = pnand %p263, %p264
      %p266 = pneg %p265
      // Predicated region
      $region45: #{tpu_custom_call.1} parent=5 // pred_check
        _
      $region46: #{tpu_custom_call.1} parent=5 // pred_check_branch
        %268 = sbr.rel (%p265) target = $region48
      $region47: #{tpu_custom_call.1} parent=5 // pred_region
        %s269 = ssub.s32 %s18, 1
        // Predicated region
        $region49: #{tpu_custom_call.1} parent=47 // pred_check
          %p270 = pneg %p65
        $region50: #{tpu_custom_call.1} parent=47 // pred_check_branch
          %272 = sbr.rel (%p270) target = $region52
        $region51: #{tpu_custom_call.1} parent=47 // pred_region
          %274 = dma.done [#allocation4], 3072
        $region52: #{tpu_custom_call.1} parent=47 // pred_fallthru
          _
        // Predicated region
        $region53: #{tpu_custom_call.1} parent=47 // pred_check
          %p275 = pneg %p128
        $region54: #{tpu_custom_call.1} parent=47 // pred_check_branch
          %277 = sbr.rel (%p275) target = $region56
        $region55: #{tpu_custom_call.1} parent=47 // pred_region
          %279 = dma.done [#allocation7], 6144
        $region56: #{tpu_custom_call.1} parent=47 // pred_fallthru
          _
        %p280 = scmp.lt.s32.totalorder %s23, 1
        %s281 = scalar_select %p280, %s23, 1
        %s282 = smul.addr %s281, 3
        %s283 = smul.addr %s282, 8
        %s284 = scalar_lea.vmem %s0, %s283
        %p285 = pneg %p44
        %p286 = pneg %p41
        %p287 = pneg %p65
        %p288 = pneg %p62
        %p289 = pneg %p86
        %p290 = pneg %p83
        %p291 = pneg %p107
        %p292 = pneg %p104
        %p293 = pneg %p128
        %p294 = pneg %p125
        %p295 = pneg %p149
        %p296 = pneg %p146
        %p297 = pneg %p170
        %p298 = pneg %p167
        %p299 = pneg %p196
        %p300 = pneg %p193
        %s301 = sand.u32 %s183, 1
        %s302 = scalar_lea.sflag [#allocation5], %s301
        %s303 = sand.u32 %s183, 1
        %s304 = smul.addr %s303, 16
        %s305 = scalar_lea.vmem [#allocation8], %s304
        %p306 = scmp.lt.s32.totalorder %s23, 1
        %s307 = scalar_select %p306, %s23, 1
        %s308 = smul.addr %s307, 3
        %s309 = smul.addr %s308, 8
        %s310 = scalar_lea.vmem %s0, %s309
        %v311 = vld [vmem:[%s310] sm:$0xff]
        %v312 = vld [vmem:[%s310 + $0x8] sm:$0xff]
        %v313 = vld [vmem:[#allocation3] sm:$0xff]
        %v314 = vld [vmem:[#allocation3 + $0x8] sm:$0xff]
        %v315 = vld [vmem:[#allocation3 + $0x10] sm:$0xff]
        %v316 = vld [vmem:[#allocation3 + $0x18] sm:$0xff]
        %v317 = vld [vmem:[#allocation3 + $0x20] sm:$0xff]
        %v318 = vld [vmem:[#allocation3 + $0x28] sm:$0xff]
        %v319 = vld [vmem:[#allocation3 + $0x30] sm:$0xff]
        %v320 = vld [vmem:[#allocation3 + $0x38] sm:$0xff]
        %v321 = vld [vmem:[%s310 + $0x1] sm:$0xff]
        %v322 = vld [vmem:[%s310 + $0x9] sm:$0xff]
        %s323 = scalar_lea.vmem [#allocation3], 64
        %v324 = vld [vmem:[%s323] sm:$0xff]
        %v325 = vld [vmem:[%s323 + $0x8] sm:$0xff]
        %v326 = vld [vmem:[%s323 + $0x10] sm:$0xff]
        %v327 = vld [vmem:[%s323 + $0x18] sm:$0xff]
        %v328 = vld [vmem:[%s323 + $0x20] sm:$0xff]
        %v329 = vld [vmem:[%s323 + $0x28] sm:$0xff]
        %v330 = vld [vmem:[%s323 + $0x30] sm:$0xff]
        %v331 = vld [vmem:[%s323 + $0x38] sm:$0xff]
        %vm332 = vcmask 523264
        %v334 = vsel %vm332, %v321, 0
        %v337 = vsel %vm332, %v322, 0
        %339 = vmatpush.msra.mxu0 0.0
        %340 = vmatpush.msra.mxu0 0.0
        %341 = vmatpush.msra.mxu0 0.0
        %342 = vmatpush.msra.mxu0 0.0
        %343 = vmatpush.msra.mxu0 0.0
        %344 = vmatpush.msra.mxu0 0.0
        %345 = vmatpush.msra.mxu0 0.0
        %346 = vmatpush.msra.mxu0 0.0
        %347 = vmatpush.msra.mxu0 %v331
        %348 = vmatpush.msra.mxu0 %v330
        %349 = vmatpush.msra.mxu0 %v329
        %350 = vmatpush.msra.mxu0 %v328
        %351 = vmatpush.msra.mxu0 %v327
        %352 = vmatpush.msra.mxu0 %v326
        %353 = vmatpush.msra.mxu0 %v325
        %354 = vmatpush.msra.mxu0 %v324
        %355 = vmatmul.f32.gmra.mxu0 %v334
        %v356 = vpop.f32.mrf.mxu0
        %v357 = vadd.f32 0.0, %v356
        %358 = vmatmul.f32.gmra.mxu0 %v337
        %v359 = vpop.f32.mrf.mxu0
        %v360 = vadd.f32 0.0, %v359
        %361 = vdwg.mxu0
        %v363 = vsel %vm332, %v311, 0
        %v366 = vsel %vm332, %v312, 0
        %368 = vmatpush.msra.mxu0 0.0
        %369 = vmatpush.msra.mxu0 0.0
        %370 = vmatpush.msra.mxu0 0.0
        %371 = vmatpush.msra.mxu0 0.0
        %372 = vmatpush.msra.mxu0 0.0
        %373 = vmatpush.msra.mxu0 0.0
        %374 = vmatpush.msra.mxu0 0.0
        %375 = vmatpush.msra.mxu0 0.0
        %376 = vmatpush.msra.mxu0 %v320
        %377 = vmatpush.msra.mxu0 %v319
        %378 = vmatpush.msra.mxu0 %v318
        %379 = vmatpush.msra.mxu0 %v317
        %380 = vmatpush.msra.mxu0 %v316
        %381 = vmatpush.msra.mxu0 %v315
        %382 = vmatpush.msra.mxu0 %v314
        %383 = vmatpush.msra.mxu0 %v313
        %384 = vmatmul.f32.gmra.mxu0 %v363
        %v385 = vpop.f32.mrf.mxu0
        %v386 = vadd.f32 %v357, %v385
        %387 = vmatmul.f32.gmra.mxu0 %v366
        %v388 = vpop.f32.mrf.mxu0
        %v389 = vadd.f32 %v360, %v388
        %390 = vdwg.mxu0
        %v391 = vld [vmem:[%s310 + $0x2] sm:$0xff]
        %v392 = vld [vmem:[%s310 + $0xa] sm:$0xff]
        %s393 = scalar_lea.vmem [#allocation3], 128
        %v394 = vld [vmem:[%s393] sm:$0xff]
        %v395 = vld [vmem:[%s393 + $0x8] sm:$0xff]
        %v396 = vld [vmem:[%s393 + $0x10] sm:$0xff]
        %v397 = vld [vmem:[%s393 + $0x18] sm:$0xff]
        %v398 = vld [vmem:[%s393 + $0x20] sm:$0xff]
        %v399 = vld [vmem:[%s393 + $0x28] sm:$0xff]
        %v400 = vld [vmem:[%s393 + $0x30] sm:$0xff]
        %v401 = vld [vmem:[%s393 + $0x38] sm:$0xff]
        %v403 = vsel %vm332, %v391, 0
        %v406 = vsel %vm332, %v392, 0
        %408 = vmatpush.msra.mxu0 0.0
        %409 = vmatpush.msra.mxu0 0.0
        %410 = vmatpush.msra.mxu0 0.0
        %411 = vmatpush.msra.mxu0 0.0
        %412 = vmatpush.msra.mxu0 0.0
        %413 = vmatpush.msra.mxu0 0.0
        %414 = vmatpush.msra.mxu0 0.0
        %415 = vmatpush.msra.mxu0 0.0
        %416 = vmatpush.msra.mxu0 %v401
        %417 = vmatpush.msra.mxu0 %v400
        %418 = vmatpush.msra.mxu0 %v399
        %419 = vmatpush.msra.mxu0 %v398
        %420 = vmatpush.msra.mxu0 %v397
        %421 = vmatpush.msra.mxu0 %v396
        %422 = vmatpush.msra.mxu0 %v395
        %423 = vmatpush.msra.mxu0 %v394
        %424 = vmatmul.f32.gmra.mxu0 %v403
        %v425 = vpop.f32.mrf.mxu0
        %v426 = vadd.f32 0.0, %v425
        %427 = vmatmul.f32.gmra.mxu0 %v406
        %v428 = vpop.f32.mrf.mxu0
        %v429 = vadd.f32 0.0, %v428
        %430 = vdwg.mxu0
        %v431 = vadd.f32 %v386, %v426
        %v432 = vadd.f32 %v389, %v429
        %v433 = vld [vmem:[%s2] sm:$0x1]
        %v435 = vperm.slane %v433, 0
        %v437 = vmul.f32 %v431, %v435
        %v438 = vmul.f32 %v432, %v435
        %v439 = vld [vmem:[%s3] sm:$0x1]
        %v441 = vperm.slane %v439, 0
        %v443 = vadd.f32 %v437, %v441
        %v444 = vadd.f32 %v438, %v441
        %v445 = vmax.f32 %v443, 0.0
        %v446 = vmax.f32 %v444, 0.0
        %447 = vst [vmem:[#allocation2] sm:$0x1] 0.0
        %448 = vst [vmem:[#allocation2 + $0x11] sm:$0x1] 0.0
        %449 = vst [vmem:[#allocation2 + $0x1] sm:$0xff] %v445
        %450 = vst [vmem:[#allocation2 + $0x9] sm:$0xff] %v446
        %v451 = vld [vmem:[#allocation2] sm:$0xff]
        %v452 = vld [vmem:[#allocation2 + $0x8] sm:$0xff]
        %v453 = vld [vmem:[#allocation6] sm:$0xff]
        %v454 = vld [vmem:[#allocation6 + $0x8] sm:$0xff]
        %v455 = vld [vmem:[#allocation6 + $0x10] sm:$0xff]
        %v456 = vld [vmem:[#allocation6 + $0x18] sm:$0xff]
        %v457 = vld [vmem:[#allocation6 + $0x20] sm:$0xff]
        %v458 = vld [vmem:[#allocation6 + $0x28] sm:$0xff]
        %v459 = vld [vmem:[#allocation6 + $0x30] sm:$0xff]
        %v460 = vld [vmem:[#allocation6 + $0x38] sm:$0xff]
        %v461 = vld [vmem:[#allocation6 + $0x40] sm:$0xff]
        %v462 = vld [vmem:[#allocation6 + $0x48] sm:$0xff]
        %v463 = vld [vmem:[#allocation6 + $0x50] sm:$0xff]
        %v464 = vld [vmem:[#allocation6 + $0x58] sm:$0xff]
        %v465 = vld [vmem:[#allocation6 + $0x60] sm:$0xff]
        %v466 = vld [vmem:[#allocation6 + $0x68] sm:$0xff]
        %v467 = vld [vmem:[#allocation6 + $0x70] sm:$0xff]
        %v468 = vld [vmem:[#allocation6 + $0x78] sm:$0xff]
        %v469 = vld [vmem:[#allocation2 + $0x1] sm:$0xff]
        %v470 = vld [vmem:[#allocation2 + $0x9] sm:$0xff]
        %s471 = scalar_lea.vmem [#allocation6], 128
        %v472 = vld [vmem:[%s471] sm:$0xff]
        %v473 = vld [vmem:[%s471 + $0x8] sm:$0xff]
        %v474 = vld [vmem:[%s471 + $0x10] sm:$0xff]
        %v475 = vld [vmem:[%s471 + $0x18] sm:$0xff]
        %v476 = vld [vmem:[%s471 + $0x20] sm:$0xff]
        %v477 = vld [vmem:[%s471 + $0x28] sm:$0xff]
        %v478 = vld [vmem:[%s471 + $0x30] sm:$0xff]
        %v479 = vld [vmem:[%s471 + $0x38] sm:$0xff]
        %v480 = vld [vmem:[%s471 + $0x40] sm:$0xff]
        %v481 = vld [vmem:[%s471 + $0x48] sm:$0xff]
        %v482 = vld [vmem:[%s471 + $0x50] sm:$0xff]
        %v483 = vld [vmem:[%s471 + $0x58] sm:$0xff]
        %v484 = vld [vmem:[%s471 + $0x60] sm:$0xff]
        %v485 = vld [vmem:[%s471 + $0x68] sm:$0xff]
        %v486 = vld [vmem:[%s471 + $0x70] sm:$0xff]
        %v487 = vld [vmem:[%s471 + $0x78] sm:$0xff]
        %488 = vmatpush.msra.mxu0 %v487
        %489 = vmatpush.msra.mxu0 %v486
        %490 = vmatpush.msra.mxu0 %v485
        %491 = vmatpush.msra.mxu0 %v484
        %492 = vmatpush.msra.mxu0 %v483
        %493 = vmatpush.msra.mxu0 %v482
        %494 = vmatpush.msra.mxu0 %v481
        %495 = vmatpush.msra.mxu0 %v480
        %496 = vmatpush.msra.mxu0 %v479
        %497 = vmatpush.msra.mxu0 %v478
        %498 = vmatpush.msra.mxu0 %v477
        %499 = vmatpush.msra.mxu0 %v476
        %500 = vmatpush.msra.mxu0 %v475
        %501 = vmatpush.msra.mxu0 %v474
        %502 = vmatpush.msra.mxu0 %v473
        %503 = vmatpush.msra.mxu0 %v472
        %504 = vmatmul.f32.gmra.mxu0 %v469
        %v505 = vpop.f32.mrf.mxu0
        %v506 = vadd.f32 0.0, %v505
        %507 = vmatmul.f32.gmra.mxu0 %v470
        %v508 = vpop.f32.mrf.mxu0
        %v509 = vadd.f32 0.0, %v508
        %510 = vdwg.mxu0
        %511 = vmatpush.msra.mxu0 %v468
        %512 = vmatpush.msra.mxu0 %v467
        %513 = vmatpush.msra.mxu0 %v466
        %514 = vmatpush.msra.mxu0 %v465
        %515 = vmatpush.msra.mxu0 %v464
        %516 = vmatpush.msra.mxu0 %v463
        %517 = vmatpush.msra.mxu0 %v462
        %518 = vmatpush.msra.mxu0 %v461
        %519 = vmatpush.msra.mxu0 %v460
        %520 = vmatpush.msra.mxu0 %v459
        %521 = vmatpush.msra.mxu0 %v458
        %522 = vmatpush.msra.mxu0 %v457
        %523 = vmatpush.msra.mxu0 %v456
        %524 = vmatpush.msra.mxu0 %v455
        %525 = vmatpush.msra.mxu0 %v454
        %526 = vmatpush.msra.mxu0 %v453
        %527 = vmatmul.f32.gmra.mxu0 %v451
        %v528 = vpop.f32.mrf.mxu0
        %v529 = vadd.f32 %v506, %v528
        %530 = vmatmul.f32.gmra.mxu0 %v452
        %v531 = vpop.f32.mrf.mxu0
        %v532 = vadd.f32 %v509, %v531
        %533 = vdwg.mxu0
        %v534 = vld [vmem:[#allocation2 + $0x2] sm:$0xff]
        %v535 = vld [vmem:[#allocation2 + $0xa] sm:$0xff]
        %s536 = scalar_lea.vmem [#allocation6], 256
        %v537 = vld [vmem:[%s536] sm:$0xff]
        %v538 = vld [vmem:[%s536 + $0x8] sm:$0xff]
        %v539 = vld [vmem:[%s536 + $0x10] sm:$0xff]
        %v540 = vld [vmem:[%s536 + $0x18] sm:$0xff]
        %v541 = vld [vmem:[%s536 + $0x20] sm:$0xff]
        %v542 = vld [vmem:[%s536 + $0x28] sm:$0xff]
        %v543 = vld [vmem:[%s536 + $0x30] sm:$0xff]
        %v544 = vld [vmem:[%s536 + $0x38] sm:$0xff]
        %v545 = vld [vmem:[%s536 + $0x40] sm:$0xff]
        %v546 = vld [vmem:[%s536 + $0x48] sm:$0xff]
        %v547 = vld [vmem:[%s536 + $0x50] sm:$0xff]
        %v548 = vld [vmem:[%s536 + $0x58] sm:$0xff]
        %v549 = vld [vmem:[%s536 + $0x60] sm:$0xff]
        %v550 = vld [vmem:[%s536 + $0x68] sm:$0xff]
        %v551 = vld [vmem:[%s536 + $0x70] sm:$0xff]
        %v552 = vld [vmem:[%s536 + $0x78] sm:$0xff]
        %553 = vmatpush.msra.mxu0 %v552
        %554 = vmatpush.msra.mxu0 %v551
        %555 = vmatpush.msra.mxu0 %v550
        %556 = vmatpush.msra.mxu0 %v549
        %557 = vmatpush.msra.mxu0 %v548
        %558 = vmatpush.msra.mxu0 %v547
        %559 = vmatpush.msra.mxu0 %v546
        %560 = vmatpush.msra.mxu0 %v545
        %561 = vmatpush.msra.mxu0 %v544
        %562 = vmatpush.msra.mxu0 %v543
        %563 = vmatpush.msra.mxu0 %v542
        %564 = vmatpush.msra.mxu0 %v541
        %565 = vmatpush.msra.mxu0 %v540
        %566 = vmatpush.msra.mxu0 %v539
        %567 = vmatpush.msra.mxu0 %v538
        %568 = vmatpush.msra.mxu0 %v537
        %569 = vmatmul.f32.gmra.mxu0 %v534
        %v570 = vpop.f32.mrf.mxu0
        %v571 = vadd.f32 0.0, %v570
        %572 = vmatmul.f32.gmra.mxu0 %v535
        %v573 = vpop.f32.mrf.mxu0
        %v574 = vadd.f32 0.0, %v573
        %575 = vdwg.mxu0
        %v576 = vadd.f32 %v529, %v571
        %v577 = vadd.f32 %v532, %v574
        %v578 = vld [vmem:[%s5] sm:$0x1]
        %v580 = vperm.slane %v578, 0
        %v582 = vmul.f32 %v576, %v580
        %v583 = vmul.f32 %v577, %v580
        %v584 = vld [vmem:[%s6] sm:$0x1]
        %v586 = vperm.slane %v584, 0
        %v588 = vadd.f32 %v582, %v586
        %v589 = vadd.f32 %v583, %v586
        %v590 = vmax.f32 %v588, 0.0
        %v591 = vmax.f32 %v589, 0.0
        %592 = vst [vmem:[%s305] sm:$0xff] %v590
        %593 = vst [vmem:[%s305 + $0x8] sm:$0xff] %v591
        %s594 = sand.u32 %s183, 1
        %s595 = scalar_lea.sflag [#allocation5], %s594
        %s596 = sand.u32 %s183, 1
        %s597 = smul.addr %s596, 16
        %s598 = scalar_lea.vmem [#allocation8], %s597
        // Predicated region
        $region57: #{tpu_custom_call.1} parent=47 // pred_check
          %p599 = pneg %p193
        $region58: #{tpu_custom_call.1} parent=47 // pred_check_branch
          %601 = sbr.rel (%p599) target = $region60
        $region59: #{tpu_custom_call.1} parent=47 // pred_region
          %603 = vsyncadd %s595, 0
          %s604 = smul.addr %s23, 2
          %s605 = smul.addr %s604, 8
          %s606 = scalar_lea.hbm %s7, %s605
          %s607 = sshll.u32 %s598, 4
          %s608 = int_to_ptr.vmem [resolvable:$true] %s607
          %s609 = sshll.u32 %s606, 4
          %s610 = int_to_ptr.hbm [resolvable:$true] %s609
          %615 = dma.vmem_to_hbm [thread:$0]  %s608, 256, %s610, %s595, 128, 128, 8
        $region60: #{tpu_custom_call.1} parent=47 // pred_fallthru
          _
      $region48: #{tpu_custom_call.1} parent=5 // pred_fallthru
        _
      %p616 = scmp.le.s32.totalorder 2, %s18
      // Predicated region
      $region61: #{tpu_custom_call.1} parent=5 // pred_check
        %p617 = pneg %p616
      $region62: #{tpu_custom_call.1} parent=5 // pred_check_branch
        %619 = sbr.rel (%p617) target = $region64
      $region63: #{tpu_custom_call.1} parent=5 // pred_region
        %s620 = ssub.s32 %s18, 2
        // Predicated region
        $region65: #{tpu_custom_call.1} parent=63 // pred_check
          %p621 = pneg %p199
        $region66: #{tpu_custom_call.1} parent=63 // pred_check_branch
          %623 = sbr.rel (%p621) target = $region68
        $region67: #{tpu_custom_call.1} parent=63 // pred_region
          %s624 = sand.u32 %s184, 1
          %s625 = scalar_lea.sflag [#allocation5], %s624
          %s626 = sand.u32 %s184, 1
          %s627 = smul.addr %s626, 16
          %s628 = scalar_lea.vmem [#allocation8], %s627
          %630 = dma.done %s625, 256
        $region68: #{tpu_custom_call.1} parent=63 // pred_fallthru
          _
      $region64: #{tpu_custom_call.1} parent=5 // pred_fallthru
        _
    $region6: #{tpu_custom_call.1} parent=1 // loop_footer
      %s22 = sadd.s32 1, %s18
    $region7: #{tpu_custom_call.1} parent=1 // loop_footer_branch
      %17 = sbr.rel target = $region3
    $region8: #{tpu_custom_call.1} parent=1 // loop_exit
      _
    %631 = vsyncpa [#allocation4], 1
    %s632 = scalar_lea.sflag [#allocation4], 1
    %633 = vsyncpa %s632, 1
    %634 = vsyncpa [#allocation7], 1
    %635 = vsyncpa [#allocation5], 1
    %s636 = scalar_lea.sflag [#allocation5], 1
    %637 = vsyncpa %s636, 1

</llo_original>
